<compile_context>
chip_gen: v5e
topology: v5e:2x2
jax: 0.10.0
libtpu: 0.0.40
codegen_flags: <defaults>
</compile_context>

<pallas_src>
import functools

import jax
import jax.numpy as jnp
from jax.experimental import pallas as pl
from jax.experimental.pallas import tpu as pltpu


# MXU operand dtype.  f32 accumulation is kept everywhere regardless.
# Set to jnp.float32 for a bit-tight check against the f32 reference.
MATMUL_DTYPE = jnp.bfloat16


def _round_up(a, m):
    return ((a + m - 1) // m) * m


# ----------------------------------------------------------------------------
# Fused Pallas kernel: the whole GraphAndConv stack for one batch tile
# ----------------------------------------------------------------------------
def _stack_kernel(adj_ref, x_ref, *refs, couts, L, bt, n):
    """refs = [w_0, b_0, ..., w_{nl-1}, b_{nl-1}, out_0, ..., out_{nl-1}].

    adj_ref : (bt, N, N)            matmul dtype
    x_ref   : (bt, N, Kin0_pad)     matmul dtype (lane-dense, zero-padded to 128x)
    w_i     : (Kin_i, 2*L*Cout_i)   matmul dtype  [block-diag linear | banded conv]
    b_i     : (1, 2*L*Cout_i)       f32           [tiled b_lin | tiled b_conv]
    out_i   : (bt, N, L*Cout_i)     f32
    """
    nl = len(couts)
    w_refs = refs[0:2 * nl:2]
    b_refs = refs[1:2 * nl:2]
    out_refs = refs[2 * nl:]

    adj = adj_ref[...]                                     # (bt, N, N)
    # Fold the batch tile into the MXU M dimension: bt*N rows per weight matmul.
    h = x_ref[...].reshape(bt * n, x_ref.shape[-1])        # (bt*N, Kin0_pad)

    for i, cout in enumerate(couts):
        if i > 0:
            h = jnp.maximum(h, 0.0)                        # ReLU between layers, f32 VPU
        m = L * cout
        w = w_refs[i][...]
        # One MXU matmul covers Linear(x) AND the full K-tap "same" Conv1d;
        # bf16 operands, f32 accumulation.
        y = jnp.dot(h.astype(w.dtype), w,
                    preferred_element_type=jnp.float32) + b_refs[i][...]   # (bt*N, 2m)
        lin = y[:, :m].reshape(bt, n, m)                   # Linear(x) + b_lin
        conv = y[:, m:].reshape(bt, n, m)                  # Conv1d(x) + b_conv
        # Graph mixing: per-graph adj @ lin (bias applied before adj, as in the ref).
        graph = jnp.einsum("bij,bjm->bim", adj, lin.astype(adj.dtype),
                           preferred_element_type=jnp.float32)             # (bt, N, m)
        out = conv + graph                                 # f32
        out_refs[i][...] = out
        h = out.reshape(bt * n, m)                         # stays resident in VMEM


# ----------------------------------------------------------------------------
# Fused-weight construction (hoisted: run ONCE per parameter set)
# ----------------------------------------------------------------------------
def _build_fused_weights(p, L, pad_rows_to=None):
    """Fold Linear + "same" Conv1d of one layer into a single matmul weight.

      w_big : (pad_rows_to or L*Cin, 2*L*Cout) = [block-diag(w_lin) | banded(w_conv)]
      b_big : (1, 2*L*Cout)                    = [tile(b_lin, L)    | tile(b_conv, L)]
    """
    w_conv = p["w_conv"]                       # (K, Cin, Cout)
    w_lin = p["w_lin"]                         # (Cin, Cout)
    b_conv = p["b_conv"].reshape(-1)           # (Cout,)
    b_lin = p["b_lin"].reshape(-1)             # (Cout,)
    K, Cin, Cout = w_conv.shape
    assert K % 2 == 1, "only odd conv kernel sizes give symmetric 'same' padding"
    pad = (K - 1) // 2

    # Linear applied independently at each of the L positions -> block diagonal.
    eye = jnp.eye(L, dtype=w_lin.dtype)
    w_lin_bd = jnp.kron(eye, w_lin)            # (L*Cin, L*Cout)

    # "same"-padded Conv1d along L -> banded block-Toeplitz:
    #   out[l] = sum_k x[l + k - pad] @ w_conv[k]
    w_conv_band = jnp.zeros((L * Cin, L * Cout), w_conv.dtype)
    for k in range(K):
        shift = jnp.eye(L, k=pad - k, dtype=w_conv.dtype)  # S[src,l]=1 iff src=l+k-pad
        w_conv_band = w_conv_band + jnp.kron(shift, w_conv[k])

    w_big = jnp.concatenate([w_lin_bd, w_conv_band], axis=1)      # (L*Cin, 2*L*Cout)
    if pad_rows_to is not None and pad_rows_to > w_big.shape[0]:  # layer-0 lane padding
        w_big = jnp.pad(w_big, ((0, pad_rows_to - w_big.shape[0]), (0, 0)))
    b_big = jnp.concatenate([jnp.tile(b_lin, L),
                             jnp.tile(b_conv, L)])[None, :]       # (1, 2*L*Cout)
    return w_big, b_big


def prepare_fused_params(params, L, matmul_dtype=MATMUL_DTYPE):
    """Build the fused per-layer weights once (hoisted out of the forward call)."""
    cin0 = params[0]["w_lin"].shape[0]
    kin0_pad = _round_up(L * cin0, 128)        # full-lane layer-0 loads / MXU K-dim
    fused = []
    for i, p in enumerate(params):
        w, b = _build_fused_weights(p, L, pad_rows_to=kin0_pad if i == 0 else None)
        fused.append((w.astype(matmul_dtype), b.astype(jnp.float32)))
    return fused


# ----------------------------------------------------------------------------
# Forward pass: one pallas_call for the whole stack
# ----------------------------------------------------------------------------
def graph_and_conv_stack(adj, x, fused_params, *, batch_tile=None):
    """adj:(B,N,N)  x:(B,N,L,Cin)  fused_params: prepare_fused_params(...).
    Returns a list of per-layer outputs, each (B, N, L, Cout_i) in f32."""
    B, N, L, cin0 = x.shape
    matmul_dtype = fused_params[0][0].dtype
    kin0_pad = fused_params[0][0].shape[0]
    couts = [w.shape[1] // (2 * L) for w, _ in fused_params]

    # Layout/dtype plumbing once, in the wrapper: lane-dense (B, N, L*C),
    # zero-padded to a 128-lane multiple, MXU operand dtype.
    x_lc = x.reshape(B, N, L * cin0)
    if kin0_pad > L * cin0:
        x_lc = jnp.pad(x_lc, ((0, 0), (0, 0), (0, kin0_pad - L * cin0)))
    x_lc = x_lc.astype(matmul_dtype)
    adj_m = adj.astype(matmul_dtype)

    # Batch tile: fold batch into the MXU M dim (target ~256 rows for v6e/v7x;
    # 128 suffices on v5e).  bt must divide B.
    if batch_tile is None:
        bt = min(B, max(1, -(-256 // N)))
        while B % bt:
            bt -= 1
    else:
        bt = batch_tile
        assert B % bt == 0
    # NOTE(v7x): if B//bt == 1 the second TensorCore idles; for large B prefer
    # an even grid extent (e.g. bt = B // 2).

    in_specs = [
        pl.BlockSpec((bt, N, N), lambda b: (b, 0, 0)),
        pl.BlockSpec((bt, N, kin0_pad), lambda b: (b, 0, 0)),
    ]
    fused_flat = []
    for w, bias in fused_params:
        fused_flat += [w, bias]
        # Grid-invariant index maps -> fetched once.  On v7x with large L add
        # pipeline_mode=pl.Buffered(1) here to drop the second weight buffer.
        in_specs += [pl.BlockSpec(w.shape, lambda b: (0, 0)),
                     pl.BlockSpec(bias.shape, lambda b: (0, 0))]
    out_shapes = tuple(jax.ShapeDtypeStruct((B, N, L * c), jnp.float32) for c in couts)
    out_specs = tuple(pl.BlockSpec((bt, N, L * c), lambda b: (b, 0, 0)) for c in couts)

    kernel = functools.partial(_stack_kernel, couts=tuple(couts), L=L, bt=bt, n=N)

    outs_lc = pl.pallas_call(
        kernel,
        out_shape=out_shapes,
        grid=(B // bt,),
        in_specs=in_specs,
        out_specs=out_specs,
        compiler_params=pltpu.CompilerParams(
            dimension_semantics=("parallel",),
            vmem_limit_bytes=64 * 1024 * 1024,
        ),
    )(adj_m, x_lc, *fused_flat)

    # Lane-dense (B, N, L*Cout) inside the kernel; reshape back in the wrapper.
    return [o.reshape(B, N, L, c) for o, c in zip(outs_lc, couts)]


# ----------------------------------------------------------------------------
# Parameter init (shapes match the PyTorch module)
# ----------------------------------------------------------------------------
def init_params(key, in_channels, hidden_channel_list, out_channels,
                conv_kernel_sizes):
    channels = [in_channels] + list(hidden_channel_list) + [out_channels]
    params = []
    for i in range(len(channels) - 1):
        cin, cout, k = channels[i], channels[i + 1], conv_kernel_sizes[i]
        key, k1, k2, k3, k4 = jax.random.split(key, 5)
        scale = 1.0 / jnp.sqrt(cin)
        params.append(dict(
            w_conv=jax.random.normal(k1, (k, cin, cout), jnp.float32) * scale,
            b_conv=jax.random.normal(k2, (1, cout), jnp.float32) * scale,
            w_lin=jax.random.normal(k3, (cin, cout), jnp.float32) * scale,
            b_lin=jax.random.normal(k4, (1, cout), jnp.float32) * scale,
        ))
    return params


# ----------------------------------------------------------------------------
# Pure-JAX f32 reference (original, un-fused formulation)
# ----------------------------------------------------------------------------
def _ref_layer(adj, x, p, apply_relu):
    if apply_relu:
        x = jnp.maximum(x, 0.0)
    lin = jnp.einsum("bnlc,cd->bnld", x, p["w_lin"]) + p["b_lin"][0]
    graph = jnp.einsum("bij,bjld->bild", adj, lin)
    K = p["w_conv"].shape[0]
    pad = (K - 1) // 2
    x_pad = jnp.pad(x, ((0, 0), (0, 0), (pad, pad), (0, 0)))
    L = x.shape[2]
    conv = p["b_conv"][0]
    for k in range(K):
        conv = conv + jnp.einsum("bnlc,cd->bnld", x_pad[:, :, k:k + L, :],
                                 p["w_conv"][k])
    return conv + graph


def _ref_stack(adj, x, params):
    outs = []
    for i, p in enumerate(params):
        x = _ref_layer(adj, x, p, apply_relu=(i > 0))
        outs.append(x)
    return outs


# ----------------------------------------------------------------------------
if __name__ == "__main__":
    B, N, L = 2, 8, 16
    in_channels = 4
    hidden_channel_list = [8, 16]
    out_channels = 8
    conv_kernel_sizes = [3, 1, 3]

    key = jax.random.PRNGKey(0)
    key, k_adj, k_x, k_p = jax.random.split(key, 4)

    # symmetric-ish adjacency with self loops (values only matter for the math)
    adj_raw = jax.random.uniform(k_adj, (B, N, N), jnp.float32)
    adj = 0.5 * (adj_raw + jnp.swapaxes(adj_raw, 1, 2)) + jnp.eye(N)[None]

    x = jax.random.normal(k_x, (B, N, L, in_channels), jnp.float32)

    params = init_params(k_p, in_channels, hidden_channel_list, out_channels,
                         conv_kernel_sizes)

    # Fused weights built ONCE (hoisted out of the forward pass).
    fused = prepare_fused_params(params, L)

    fwd = jax.jit(graph_and_conv_stack)
    outs = fwd(adj, x, fused)
    outs = [jax.block_until_ready(o) for o in outs]

    refs = _ref_stack(adj, x, params)
    # bf16 MXU operands (f32 accumulation) -> relative-to-max tolerance.
    tol = 1e-3 if MATMUL_DTYPE == jnp.float32 else 5e-2
    for o, r in zip(outs, refs):
        assert o.shape == r.shape
        err = float(jnp.max(jnp.abs(o - r)))
        scale = float(jnp.max(jnp.abs(r))) + 1e-6
        assert err <= tol * scale, f"mismatch vs reference: {err} > {tol * scale}"

    print("KERNEL_OK")
</pallas_src>

<mosaic_0001>
module attributes {stable_mosaic.version = 11 : i64} {
  func.func @_stack_kernel(%arg0: i32, %arg1: memref<2x8x8xbf16, #tpu.memory_space<vmem>>, %arg2: memref<2x8x128xbf16, #tpu.memory_space<vmem>>, %arg3: memref<128x256xbf16, #tpu.memory_space<vmem>>, %arg4: memref<1x256xf32, #tpu.memory_space<vmem>>, %arg5: memref<128x512xbf16, #tpu.memory_space<vmem>>, %arg6: memref<1x512xf32, #tpu.memory_space<vmem>>, %arg7: memref<256x256xbf16, #tpu.memory_space<vmem>>, %arg8: memref<1x256xf32, #tpu.memory_space<vmem>>, %arg9: memref<2x8x128xf32, #tpu.memory_space<vmem>>, %arg10: memref<2x8x256xf32, #tpu.memory_space<vmem>>, %arg11: memref<2x8x128xf32, #tpu.memory_space<vmem>>) attributes {dimension_semantics = [#tpu.dimension_semantics<parallel>], iteration_bounds = array<i64: 1>, scalar_prefetch = 0 : i64, scratch_operands = 0 : i64, tpu.core_type = #tpu.core_type<tc>, window_params = [{transform_indices = @transform_0, window_bounds = array<i64: 2, 8, 8>}, {transform_indices = @transform_1, window_bounds = array<i64: 2, 8, 128>}, {pipeline_mode = #tpu.pipeline_mode<synchronous>, transform_indices = @transform_2, window_bounds = array<i64: 128, 256>}, {pipeline_mode = #tpu.pipeline_mode<synchronous>, transform_indices = @transform_3, window_bounds = array<i64: 1, 256>}, {pipeline_mode = #tpu.pipeline_mode<synchronous>, transform_indices = @transform_4, window_bounds = array<i64: 128, 512>}, {pipeline_mode = #tpu.pipeline_mode<synchronous>, transform_indices = @transform_5, window_bounds = array<i64: 1, 512>}, {pipeline_mode = #tpu.pipeline_mode<synchronous>, transform_indices = @transform_6, window_bounds = array<i64: 256, 256>}, {pipeline_mode = #tpu.pipeline_mode<synchronous>, transform_indices = @transform_7, window_bounds = array<i64: 1, 256>}, {transform_indices = @transform_8, window_bounds = array<i64: 2, 8, 128>}, {transform_indices = @transform_9, window_bounds = array<i64: 2, 8, 256>}, {transform_indices = @transform_10, window_bounds = array<i64: 2, 8, 128>}]} {
    %c0 = arith.constant 0 : index
    %c0_0 = arith.constant 0 : index
    %c0_1 = arith.constant 0 : index
    %0 = vector.load %arg1[%c0, %c0_0, %c0_1] : memref<2x8x8xbf16, #tpu.memory_space<vmem>>, vector<2x8x8xbf16>
    %c0_2 = arith.constant 0 : index
    %c0_3 = arith.constant 0 : index
    %c0_4 = arith.constant 0 : index
    %1 = vector.load %arg2[%c0_2, %c0_3, %c0_4] : memref<2x8x128xbf16, #tpu.memory_space<vmem>>, vector<2x8x128xbf16>
    %2 = vector.shape_cast %1 : vector<2x8x128xbf16> to vector<16x128xbf16>
    %c0_5 = arith.constant 0 : index
    %c0_6 = arith.constant 0 : index
    %3 = vector.load %arg3[%c0_5, %c0_6] : memref<128x256xbf16, #tpu.memory_space<vmem>>, vector<128x256xbf16>
    %cst = arith.constant dense<0.000000e+00> : vector<16x256xf32>
    %4 = tpu.matmul %2, %3, %cst {dimension_numbers = #tpu.dot_dimension_numbers<[1], [0], [0], [1], [0, 0, 1, 1], [], []>} : vector<16x128xbf16>, vector<128x256xbf16>, vector<16x256xf32> -> vector<16x256xf32>
    %c0_7 = arith.constant 0 : index
    %c0_8 = arith.constant 0 : index
    %5 = vector.load %arg4[%c0_7, %c0_8] : memref<1x256xf32, #tpu.memory_space<vmem>>, vector<1x256xf32>
    %6 = vector.broadcast %5 : vector<1x256xf32> to vector<16x256xf32>
    %7 = arith.addf %4, %6 : vector<16x256xf32>
    %8 = vector.extract_strided_slice %7 {offsets = [0, 0], sizes = [16, 128], strides = [1, 1]} : vector<16x256xf32> to vector<16x128xf32>
    %9 = vector.shape_cast %8 : vector<16x128xf32> to vector<2x8x128xf32>
    %10 = vector.extract_strided_slice %7 {offsets = [0, 128], sizes = [16, 128], strides = [1, 1]} : vector<16x256xf32> to vector<16x128xf32>
    %11 = vector.shape_cast %10 : vector<16x128xf32> to vector<2x8x128xf32>
    %12 = arith.truncf %9 : vector<2x8x128xf32> to vector<2x8x128xbf16>
    "tpu.trace_start"() <{level = 10 : i32, message = "bij,bjm->bim"}> : () -> ()
    %cst_9 = arith.constant dense<0.000000e+00> : vector<2x8x128xf32>
    %13 = tpu.matmul %0, %12, %cst_9 {dimension_numbers = #tpu.dot_dimension_numbers<[2], [1], [1], [2], [0, 0, 0, 1, 1, 2], [0], [0]>} : vector<2x8x8xbf16>, vector<2x8x128xbf16>, vector<2x8x128xf32> -> vector<2x8x128xf32>
    "tpu.trace_stop"() : () -> ()
    %14 = arith.addf %11, %13 : vector<2x8x128xf32>
    %c0_10 = arith.constant 0 : index
    %c0_11 = arith.constant 0 : index
    %c0_12 = arith.constant 0 : index
    %15 = vector.load %arg9[%c0_10, %c0_11, %c0_12] : memref<2x8x128xf32, #tpu.memory_space<vmem>>, vector<2x8x128xf32>
    tpu.vector_store %arg9[%c0_10, %c0_11, %c0_12], %14 {strides = array<i32>} : memref<2x8x128xf32, #tpu.memory_space<vmem>>, vector<2x8x128xf32>,
    %16 = vector.shape_cast %14 : vector<2x8x128xf32> to vector<16x128xf32>
    %cst_13 = arith.constant 0.000000e+00 : f32
    %17 = vector.broadcast %cst_13 : f32 to vector<16x128xf32>
    %18 = arith.maximumf %16, %17 : vector<16x128xf32>
    %c0_14 = arith.constant 0 : index
    %c0_15 = arith.constant 0 : index
    %19 = vector.load %arg5[%c0_14, %c0_15] : memref<128x512xbf16, #tpu.memory_space<vmem>>, vector<128x512xbf16>
    %20 = arith.truncf %18 : vector<16x128xf32> to vector<16x128xbf16>
    %cst_16 = arith.constant dense<0.000000e+00> : vector<16x512xf32>
    %21 = tpu.matmul %20, %19, %cst_16 {dimension_numbers = #tpu.dot_dimension_numbers<[1], [0], [0], [1], [0, 0, 1, 1], [], []>} : vector<16x128xbf16>, vector<128x512xbf16>, vector<16x512xf32> -> vector<16x512xf32>
    %c0_17 = arith.constant 0 : index
    %c0_18 = arith.constant 0 : index
    %22 = vector.load %arg6[%c0_17, %c0_18] : memref<1x512xf32, #tpu.memory_space<vmem>>, vector<1x512xf32>
    %23 = vector.broadcast %22 : vector<1x512xf32> to vector<16x512xf32>
    %24 = arith.addf %21, %23 : vector<16x512xf32>
    %25 = vector.extract_strided_slice %24 {offsets = [0, 0], sizes = [16, 256], strides = [1, 1]} : vector<16x512xf32> to vector<16x256xf32>
    %26 = vector.shape_cast %25 : vector<16x256xf32> to vector<2x8x256xf32>
    %27 = vector.extract_strided_slice %24 {offsets = [0, 256], sizes = [16, 256], strides = [1, 1]} : vector<16x512xf32> to vector<16x256xf32>
    %28 = vector.shape_cast %27 : vector<16x256xf32> to vector<2x8x256xf32>
    %29 = arith.truncf %26 : vector<2x8x256xf32> to vector<2x8x256xbf16>
    "tpu.trace_start"() <{level = 10 : i32, message = "bij,bjm->bim"}> : () -> ()
    %cst_19 = arith.constant dense<0.000000e+00> : vector<2x8x256xf32>
    %30 = tpu.matmul %0, %29, %cst_19 {dimension_numbers = #tpu.dot_dimension_numbers<[2], [1], [1], [2], [0, 0, 0, 1, 1, 2], [0], [0]>} : vector<2x8x8xbf16>, vector<2x8x256xbf16>, vector<2x8x256xf32> -> vector<2x8x256xf32>
    "tpu.trace_stop"() : () -> ()
    %31 = arith.addf %28, %30 : vector<2x8x256xf32>
    %c0_20 = arith.constant 0 : index
    %c0_21 = arith.constant 0 : index
    %c0_22 = arith.constant 0 : index
    %32 = vector.load %arg10[%c0_20, %c0_21, %c0_22] : memref<2x8x256xf32, #tpu.memory_space<vmem>>, vector<2x8x256xf32>
    tpu.vector_store %arg10[%c0_20, %c0_21, %c0_22], %31 {strides = array<i32>} : memref<2x8x256xf32, #tpu.memory_space<vmem>>, vector<2x8x256xf32>,
    %33 = vector.shape_cast %31 : vector<2x8x256xf32> to vector<16x256xf32>
    %cst_23 = arith.constant 0.000000e+00 : f32
    %34 = vector.broadcast %cst_23 : f32 to vector<16x256xf32>
    %35 = arith.maximumf %33, %34 : vector<16x256xf32>
    %c0_24 = arith.constant 0 : index
    %c0_25 = arith.constant 0 : index
    %36 = vector.load %arg7[%c0_24, %c0_25] : memref<256x256xbf16, #tpu.memory_space<vmem>>, vector<256x256xbf16>
    %37 = arith.truncf %35 : vector<16x256xf32> to vector<16x256xbf16>
    %cst_26 = arith.constant dense<0.000000e+00> : vector<16x256xf32>
    %38 = tpu.matmul %37, %36, %cst_26 {dimension_numbers = #tpu.dot_dimension_numbers<[1], [0], [0], [1], [0, 0, 1, 1], [], []>} : vector<16x256xbf16>, vector<256x256xbf16>, vector<16x256xf32> -> vector<16x256xf32>
    %c0_27 = arith.constant 0 : index
    %c0_28 = arith.constant 0 : index
    %39 = vector.load %arg8[%c0_27, %c0_28] : memref<1x256xf32, #tpu.memory_space<vmem>>, vector<1x256xf32>
    %40 = vector.broadcast %39 : vector<1x256xf32> to vector<16x256xf32>
    %41 = arith.addf %38, %40 : vector<16x256xf32>
    %42 = vector.extract_strided_slice %41 {offsets = [0, 0], sizes = [16, 128], strides = [1, 1]} : vector<16x256xf32> to vector<16x128xf32>
    %43 = vector.shape_cast %42 : vector<16x128xf32> to vector<2x8x128xf32>
    %44 = vector.extract_strided_slice %41 {offsets = [0, 128], sizes = [16, 128], strides = [1, 1]} : vector<16x256xf32> to vector<16x128xf32>
    %45 = vector.shape_cast %44 : vector<16x128xf32> to vector<2x8x128xf32>
    %46 = arith.truncf %43 : vector<2x8x128xf32> to vector<2x8x128xbf16>
    "tpu.trace_start"() <{level = 10 : i32, message = "bij,bjm->bim"}> : () -> ()
    %cst_29 = arith.constant dense<0.000000e+00> : vector<2x8x128xf32>
    %47 = tpu.matmul %0, %46, %cst_29 {dimension_numbers = #tpu.dot_dimension_numbers<[2], [1], [1], [2], [0, 0, 0, 1, 1, 2], [0], [0]>} : vector<2x8x8xbf16>, vector<2x8x128xbf16>, vector<2x8x128xf32> -> vector<2x8x128xf32>
    "tpu.trace_stop"() : () -> ()
    %48 = arith.addf %45, %47 : vector<2x8x128xf32>
    %c0_30 = arith.constant 0 : index
    %c0_31 = arith.constant 0 : index
    %c0_32 = arith.constant 0 : index
    %49 = vector.load %arg11[%c0_30, %c0_31, %c0_32] : memref<2x8x128xf32, #tpu.memory_space<vmem>>, vector<2x8x128xf32>
    tpu.vector_store %arg11[%c0_30, %c0_31, %c0_32], %48 {strides = array<i32>} : memref<2x8x128xf32, #tpu.memory_space<vmem>>, vector<2x8x128xf32>,
    return
  }
  func.func @transform_0(%arg0: i32) -> (i32, i32, i32) {
    %c0_i32 = arith.constant 0 : i32
    %c0_i32_0 = arith.constant 0 : i32
    %c0_i32_1 = arith.constant 0 : i32
    return %arg0, %c0_i32, %c0_i32_0 : i32, i32, i32
  }
  func.func @transform_1(%arg0: i32) -> (i32, i32, i32) {
    %c0_i32 = arith.constant 0 : i32
    %c0_i32_0 = arith.constant 0 : i32
    %c0_i32_1 = arith.constant 0 : i32
    return %arg0, %c0_i32, %c0_i32_0 : i32, i32, i32
  }
  func.func @transform_2(%arg0: i32) -> (i32, i32) {
    %c0_i32 = arith.constant 0 : i32
    %c0_i32_0 = arith.constant 0 : i32
    %c0_i32_1 = arith.constant 0 : i32
    return %c0_i32, %c0_i32_0 : i32, i32
  }
  func.func @transform_3(%arg0: i32) -> (i32, i32) {
    %c0_i32 = arith.constant 0 : i32
    %c0_i32_0 = arith.constant 0 : i32
    %c0_i32_1 = arith.constant 0 : i32
    return %c0_i32, %c0_i32_0 : i32, i32
  }
  func.func @transform_4(%arg0: i32) -> (i32, i32) {
    %c0_i32 = arith.constant 0 : i32
    %c0_i32_0 = arith.constant 0 : i32
    %c0_i32_1 = arith.constant 0 : i32
    return %c0_i32, %c0_i32_0 : i32, i32
  }
  func.func @transform_5(%arg0: i32) -> (i32, i32) {
    %c0_i32 = arith.constant 0 : i32
    %c0_i32_0 = arith.constant 0 : i32
    %c0_i32_1 = arith.constant 0 : i32
    return %c0_i32, %c0_i32_0 : i32, i32
  }
  func.func @transform_6(%arg0: i32) -> (i32, i32) {
    %c0_i32 = arith.constant 0 : i32
    %c0_i32_0 = arith.constant 0 : i32
    %c0_i32_1 = arith.constant 0 : i32
    return %c0_i32, %c0_i32_0 : i32, i32
  }
  func.func @transform_7(%arg0: i32) -> (i32, i32) {
    %c0_i32 = arith.constant 0 : i32
    %c0_i32_0 = arith.constant 0 : i32
    %c0_i32_1 = arith.constant 0 : i32
    return %c0_i32, %c0_i32_0 : i32, i32
  }
  func.func @transform_8(%arg0: i32) -> (i32, i32, i32) {
    %c0_i32 = arith.constant 0 : i32
    %c0_i32_0 = arith.constant 0 : i32
    %c0_i32_1 = arith.constant 0 : i32
    return %arg0, %c0_i32, %c0_i32_0 : i32, i32, i32
  }
  func.func @transform_9(%arg0: i32) -> (i32, i32, i32) {
    %c0_i32 = arith.constant 0 : i32
    %c0_i32_0 = arith.constant 0 : i32
    %c0_i32_1 = arith.constant 0 : i32
    return %arg0, %c0_i32, %c0_i32_0 : i32, i32, i32
  }
  func.func @transform_10(%arg0: i32) -> (i32, i32, i32) {
    %c0_i32 = arith.constant 0 : i32
    %c0_i32_0 = arith.constant 0 : i32
    %c0_i32_1 = arith.constant 0 : i32
    return %arg0, %c0_i32, %c0_i32_0 : i32, i32, i32
  }
}

</mosaic_0001>

<llo_original>
// kernel: graph_and_conv_stack.1
$region0: #{graph_and_conv_stack.1}
  #allocation0 [shape = 'u32[]', space=smem, size = 0x4, offset = 0x4, fixed_abs, tag = 'smem constant byte address 0x4 - core index']
  #allocation1 [shape = 'u32[72,128]{1,0:T(1,128)}', space=vmem, size = 0x9000, scoped, tag = 'internal scratch']
  %s0 = inlined_call_operand.vmem [shape: bf16[2,8,8], index: 0, kind: input, shape index: {}]
  %s1 = inlined_call_operand.vmem [shape: bf16[2,8,128], index: 1, kind: input, shape index: {}]
  %s2 = inlined_call_operand.hbm [shape: bf16[128,256], index: 2, kind: input, shape index: {}]
  %s3 = inlined_call_operand.vmem [shape: f32[1,256], index: 3, kind: input, shape index: {}]
  %s4 = inlined_call_operand.vmem [shape: bf16[128,512], index: 4, kind: input, shape index: {}]
  %s5 = inlined_call_operand.vmem [shape: f32[1,512], index: 5, kind: input, shape index: {}]
  %s6 = inlined_call_operand.hbm [shape: bf16[256,256], index: 6, kind: input, shape index: {}]
  %s7 = inlined_call_operand.vmem [shape: f32[1,256], index: 7, kind: input, shape index: {}]
  %s8 = inlined_call_operand.vmem [shape: f32[2,8,128], index: 8, kind: output, shape index: {0}]
  %s9 = inlined_call_operand.vmem [shape: f32[2,8,256], index: 9, kind: output, shape index: {1}]
  %s10 = inlined_call_operand.vmem [shape: f32[2,8,128], index: 10, kind: output, shape index: {2}]
  %11 = xla_tuple %s8, %s9, %s10
  %s12 = sld [smem:[#allocation0]]
  $region66: #{graph_and_conv_stack.1} parent=0
    _
  %s14 = ssub.s32 1, %s12
  %s15 = scalar_select 0, %s14, %s12
  $region1: #{graph_and_conv_stack.1} parent=0
    #allocation2 [shape = 'u8[65536]{0}', space=vmem, size = 0x10000, scoped, tag = 'input window, operand 2, single buffered']
    #allocation3 [shape = 's32[1]{0}', space=sflag, size = 0x4, scoped, tag = 'scoped memory for graph_and_conv_stack.1']
    #allocation4 [shape = 'u8[131072]{0}', space=vmem, size = 0x20000, scoped, tag = 'input window, operand 6, single buffered']
    #allocation5 [shape = 's32[1]{0}', space=sflag, size = 0x4, scoped, tag = 'scoped memory for graph_and_conv_stack.1']
    %16 = vsyncpa [#allocation3], 0
    %17 = vsyncpa [#allocation5], 0
    // Predicated region
    $region2: #{graph_and_conv_stack.1} parent=1 // pred_check
      _
    $region3: #{graph_and_conv_stack.1} parent=1 // pred_check_branch
      %19 = sbr.rel (0) target = $region5
    $region4: #{graph_and_conv_stack.1} parent=1 // pred_region
      _
    $region5: #{graph_and_conv_stack.1} parent=1 // pred_fallthru
      _
    // Predicated region
    $region6: #{graph_and_conv_stack.1} parent=1 // pred_check
      _
    $region7: #{graph_and_conv_stack.1} parent=1 // pred_check_branch
      %21 = sbr.rel (0) target = $region9
    $region8: #{graph_and_conv_stack.1} parent=1 // pred_region
      _
    $region9: #{graph_and_conv_stack.1} parent=1 // pred_fallthru
      _
    // Predicated region
    $region10: #{graph_and_conv_stack.1} parent=1 // pred_check
      _
    $region11: #{graph_and_conv_stack.1} parent=1 // pred_check_branch
      %23 = sbr.rel (0) target = $region13
    $region12: #{graph_and_conv_stack.1} parent=1 // pred_region
      %25 = vsyncadd [#allocation3], 0
      %s26 = sshll.u32 %s2, 4
      %s27 = int_to_ptr.hbm [resolvable:$true] %s26
      %s28 = sshll.u32 [#allocation2], 4
      %s29 = int_to_ptr.vmem [resolvable:$true] %s28
      %34 = dma.hbm_to_vmem [thread:$0]  %s27, 2048, %s29, [#allocation3], 128, 128, 8
    $region13: #{graph_and_conv_stack.1} parent=1 // pred_fallthru
      _
    // Predicated region
    $region14: #{graph_and_conv_stack.1} parent=1 // pred_check
      _
    $region15: #{graph_and_conv_stack.1} parent=1 // pred_check_branch
      %36 = sbr.rel (0) target = $region17
    $region16: #{graph_and_conv_stack.1} parent=1 // pred_region
      _
    $region17: #{graph_and_conv_stack.1} parent=1 // pred_fallthru
      _
    // Predicated region
    $region18: #{graph_and_conv_stack.1} parent=1 // pred_check
      _
    $region19: #{graph_and_conv_stack.1} parent=1 // pred_check_branch
      %38 = sbr.rel (0) target = $region21
    $region20: #{graph_and_conv_stack.1} parent=1 // pred_region
      _
    $region21: #{graph_and_conv_stack.1} parent=1 // pred_fallthru
      _
    // Predicated region
    $region22: #{graph_and_conv_stack.1} parent=1 // pred_check
      _
    $region23: #{graph_and_conv_stack.1} parent=1 // pred_check_branch
      %40 = sbr.rel (0) target = $region25
    $region24: #{graph_and_conv_stack.1} parent=1 // pred_region
      _
    $region25: #{graph_and_conv_stack.1} parent=1 // pred_fallthru
      _
    // Predicated region
    $region26: #{graph_and_conv_stack.1} parent=1 // pred_check
      _
    $region27: #{graph_and_conv_stack.1} parent=1 // pred_check_branch
      %42 = sbr.rel (0) target = $region29
    $region28: #{graph_and_conv_stack.1} parent=1 // pred_region
      %44 = vsyncadd [#allocation5], 0
      %s45 = sshll.u32 %s6, 4
      %s46 = int_to_ptr.hbm [resolvable:$true] %s45
      %s47 = sshll.u32 [#allocation4], 4
      %s48 = int_to_ptr.vmem [resolvable:$true] %s47
      %53 = dma.hbm_to_vmem [thread:$0]  %s46, 4096, %s48, [#allocation5], 128, 128, 8
    $region29: #{graph_and_conv_stack.1} parent=1 // pred_fallthru
      _
    // Predicated region
    $region30: #{graph_and_conv_stack.1} parent=1 // pred_check
      _
    $region31: #{graph_and_conv_stack.1} parent=1 // pred_check_branch
      %55 = sbr.rel (0) target = $region33
    $region32: #{graph_and_conv_stack.1} parent=1 // pred_region
      _
    $region33: #{graph_and_conv_stack.1} parent=1 // pred_fallthru
      _
    // Predicated region
    $region34: #{graph_and_conv_stack.1} parent=1 // pred_check
      _
    $region35: #{graph_and_conv_stack.1} parent=1 // pred_check_branch
      %57 = sbr.rel (0) target = $region37
    $region36: #{graph_and_conv_stack.1} parent=1 // pred_region
      %59 = dma.done [#allocation3], 2048
    $region37: #{graph_and_conv_stack.1} parent=1 // pred_fallthru
      _
    // Predicated region
    $region38: #{graph_and_conv_stack.1} parent=1 // pred_check
      _
    $region39: #{graph_and_conv_stack.1} parent=1 // pred_check_branch
      %61 = sbr.rel (0) target = $region41
    $region40: #{graph_and_conv_stack.1} parent=1 // pred_region
      %63 = dma.done [#allocation5], 4096
    $region41: #{graph_and_conv_stack.1} parent=1 // pred_fallthru
      _
    %v65 = vld [vmem:[%s0] sm:$0xf]
    %v66 = vld [vmem:[%s0 + $0x4] sm:$0xf]
    %v67 = vld [vmem:[%s1] sm:$0xf]
    %v68 = vld [vmem:[%s1 + $0x4] sm:$0xf]
    %v69 = vld [vmem:[#allocation2] sm:$0xff]
    %v70 = vld [vmem:[#allocation2 + $0x8] sm:$0xff]
    %v71 = vld [vmem:[#allocation2 + $0x10] sm:$0xff]
    %v72 = vld [vmem:[#allocation2 + $0x18] sm:$0xff]
    %v73 = vld [vmem:[#allocation2 + $0x20] sm:$0xff]
    %v74 = vld [vmem:[#allocation2 + $0x28] sm:$0xff]
    %v75 = vld [vmem:[#allocation2 + $0x30] sm:$0xff]
    %v76 = vld [vmem:[#allocation2 + $0x38] sm:$0xff]
    %v77 = vld [vmem:[#allocation2 + $0x40] sm:$0xff]
    %v78 = vld [vmem:[#allocation2 + $0x48] sm:$0xff]
    %v79 = vld [vmem:[#allocation2 + $0x50] sm:$0xff]
    %v80 = vld [vmem:[#allocation2 + $0x58] sm:$0xff]
    %v81 = vld [vmem:[#allocation2 + $0x60] sm:$0xff]
    %v82 = vld [vmem:[#allocation2 + $0x68] sm:$0xff]
    %v83 = vld [vmem:[#allocation2 + $0x70] sm:$0xff]
    %v84 = vld [vmem:[#allocation2 + $0x78] sm:$0xff]
    %v85 = vld [vmem:[%s3] sm:$0x3]
    %v87 = vperm.slane %v85, 0
    %v88 = vperm.slane %v85, 1
    %v93 = vunpack.c.l.b16 %v67
    %v94 = vunpack.c.l.b16 %v68
    %v95 = vpack.c.b16 %v94, %v93
    %v113 = vunpack.c.l.b16 %v69
    %v114 = vunpack.c.h.b16 %v69
    %v115 = vunpack.c.l.b16 %v70
    %v116 = vunpack.c.h.b16 %v70
    %v117 = vunpack.c.l.b16 %v71
    %v118 = vunpack.c.h.b16 %v71
    %v119 = vunpack.c.l.b16 %v72
    %v120 = vunpack.c.h.b16 %v72
    %v121 = vunpack.c.l.b16 %v73
    %v122 = vunpack.c.h.b16 %v73
    %v123 = vunpack.c.l.b16 %v74
    %v124 = vunpack.c.h.b16 %v74
    %v125 = vunpack.c.l.b16 %v75
    %v126 = vunpack.c.h.b16 %v75
    %v127 = vunpack.c.l.b16 %v76
    %v128 = vunpack.c.h.b16 %v76
    %v129 = vunpack.c.l.b16 %v77
    %v130 = vunpack.c.h.b16 %v77
    %v131 = vunpack.c.l.b16 %v78
    %v132 = vunpack.c.h.b16 %v78
    %v133 = vunpack.c.l.b16 %v79
    %v134 = vunpack.c.h.b16 %v79
    %v135 = vunpack.c.l.b16 %v80
    %v136 = vunpack.c.h.b16 %v80
    %v137 = vunpack.c.l.b16 %v81
    %v138 = vunpack.c.h.b16 %v81
    %v139 = vunpack.c.l.b16 %v82
    %v140 = vunpack.c.h.b16 %v82
    %v141 = vunpack.c.l.b16 %v83
    %v142 = vunpack.c.h.b16 %v83
    %v143 = vunpack.c.l.b16 %v84
    %v144 = vunpack.c.h.b16 %v84
    %v145 = vpack.c.b16 %v115, %v113
    %v146 = vpack.c.b16 %v116, %v114
    %v147 = vpack.c.b16 %v119, %v117
    %v148 = vpack.c.b16 %v120, %v118
    %v149 = vpack.c.b16 %v123, %v121
    %v150 = vpack.c.b16 %v124, %v122
    %v151 = vpack.c.b16 %v127, %v125
    %v152 = vpack.c.b16 %v128, %v126
    %v153 = vpack.c.b16 %v131, %v129
    %v154 = vpack.c.b16 %v132, %v130
    %v155 = vpack.c.b16 %v135, %v133
    %v156 = vpack.c.b16 %v136, %v134
    %v157 = vpack.c.b16 %v139, %v137
    %v158 = vpack.c.b16 %v140, %v138
    %v159 = vpack.c.b16 %v143, %v141
    %v160 = vpack.c.b16 %v144, %v142
    %177 = vmatpush.bf16.msra.mxu0 %v159
    %178 = vmatpush.bf16.msra.mxu0 %v157
    %179 = vmatpush.bf16.msra.mxu0 %v155
    %180 = vmatpush.bf16.msra.mxu0 %v153
    %181 = vmatpush.bf16.msra.mxu0 %v151
    %182 = vmatpush.bf16.msra.mxu0 %v149
    %183 = vmatpush.bf16.msra.mxu0 %v147
    %184 = vmatpush.bf16.msra.mxu0 %v145
    %185 = vmatmul.bf16.gmra.mxu0 %v95
    %v186 = vpop.f32.mrf.mxu0
    %v187 = vadd.f32 %v87, %v186
    %v188 = vpop.f32.mrf.mxu0
    %v189 = vadd.f32 %v87, %v188
    %190 = vdwg.mxu0
    %191 = vmatpush.bf16.msra.mxu0 %v160
    %192 = vmatpush.bf16.msra.mxu0 %v158
    %193 = vmatpush.bf16.msra.mxu0 %v156
    %194 = vmatpush.bf16.msra.mxu0 %v154
    %195 = vmatpush.bf16.msra.mxu0 %v152
    %196 = vmatpush.bf16.msra.mxu0 %v150
    %197 = vmatpush.bf16.msra.mxu0 %v148
    %198 = vmatpush.bf16.msra.mxu0 %v146
    %199 = vmatmul.bf16.gmra.mxu0 %v95
    %v200 = vpop.f32.mrf.mxu0
    %v201 = vadd.f32 %v88, %v200
    %v202 = vpop.f32.mrf.mxu0
    %v203 = vadd.f32 %v88, %v202
    %204 = vdwg.mxu0
    %v205 = vpack.c.bf16 %v187, %v187
    %v206 = vpack.c.bf16 %v189, %v189
    %vm207 = vcmask 64512
    %v209 = vsel %vm207, %v65, 0
    %vm211 = vcmask 1043456
    %v213 = vsel %vm211, %v205, 0
    %215 = vmatpush.bf16.msra.mxu0 0
    %216 = vmatpush.bf16.msra.mxu0 0
    %217 = vmatpush.bf16.msra.mxu0 0
    %218 = vmatpush.bf16.msra.mxu0 0
    %219 = vmatpush.bf16.msra.mxu0 0
    %220 = vmatpush.bf16.msra.mxu0 0
    %221 = vmatpush.bf16.msra.mxu0 0
    %222 = vmatpush.bf16.msra.mxu0 %v213
    %223 = vmatmul.bf16.gmra.mxu0 %v209
    %v224 = vpop.f32.mrf.mxu0
    %v225 = vadd.f32 0.0, %v224
    %v226 = vpop.f32.mrf.mxu0
    %227 = vdwg.mxu0
    %v229 = vsel %vm207, %v66, 0
    %v232 = vsel %vm211, %v206, 0
    %234 = vmatpush.bf16.msra.mxu0 0
    %235 = vmatpush.bf16.msra.mxu0 0
    %236 = vmatpush.bf16.msra.mxu0 0
    %237 = vmatpush.bf16.msra.mxu0 0
    %238 = vmatpush.bf16.msra.mxu0 0
    %239 = vmatpush.bf16.msra.mxu0 0
    %240 = vmatpush.bf16.msra.mxu0 0
    %241 = vmatpush.bf16.msra.mxu0 %v232
    %242 = vmatmul.bf16.gmra.mxu0 %v229
    %v243 = vpop.f32.mrf.mxu0
    %v244 = vadd.f32 0.0, %v243
    %v245 = vpop.f32.mrf.mxu0
    %246 = vdwg.mxu0
    %v247 = vadd.f32 %v201, %v225
    %v248 = vadd.f32 %v203, %v244
    %249 = vst [vmem:[%s8] sm:$0xff] %v247
    %250 = vst [vmem:[%s8 + $0x8] sm:$0xff] %v248
    %v251 = vmax.f32 %v247, 0.0
    %v252 = vmax.f32 %v248, 0.0
    %v253 = vld [vmem:[%s4] sm:$0xff]
    %v254 = vld [vmem:[%s4 + $0x8] sm:$0xff]
    %v255 = vld [vmem:[%s4 + $0x10] sm:$0xff]
    %v256 = vld [vmem:[%s4 + $0x18] sm:$0xff]
    %v257 = vld [vmem:[%s4 + $0x20] sm:$0xff]
    %v258 = vld [vmem:[%s4 + $0x28] sm:$0xff]
    %v259 = vld [vmem:[%s4 + $0x30] sm:$0xff]
    %v260 = vld [vmem:[%s4 + $0x38] sm:$0xff]
    %v261 = vld [vmem:[%s4 + $0x40] sm:$0xff]
    %v262 = vld [vmem:[%s4 + $0x48] sm:$0xff]
    %v263 = vld [vmem:[%s4 + $0x50] sm:$0xff]
    %v264 = vld [vmem:[%s4 + $0x58] sm:$0xff]
    %v265 = vld [vmem:[%s4 + $0x60] sm:$0xff]
    %v266 = vld [vmem:[%s4 + $0x68] sm:$0xff]
    %v267 = vld [vmem:[%s4 + $0x70] sm:$0xff]
    %v268 = vld [vmem:[%s4 + $0x78] sm:$0xff]
    %v269 = vld [vmem:[%s4 + $0x80] sm:$0xff]
    %v270 = vld [vmem:[%s4 + $0x88] sm:$0xff]
    %v271 = vld [vmem:[%s4 + $0x90] sm:$0xff]
    %v272 = vld [vmem:[%s4 + $0x98] sm:$0xff]
    %v273 = vld [vmem:[%s4 + $0xa0] sm:$0xff]
    %v274 = vld [vmem:[%s4 + $0xa8] sm:$0xff]
    %v275 = vld [vmem:[%s4 + $0xb0] sm:$0xff]
    %v276 = vld [vmem:[%s4 + $0xb8] sm:$0xff]
    %v277 = vld [vmem:[%s4 + $0xc0] sm:$0xff]
    %v278 = vld [vmem:[%s4 + $0xc8] sm:$0xff]
    %v279 = vld [vmem:[%s4 + $0xd0] sm:$0xff]
    %v280 = vld [vmem:[%s4 + $0xd8] sm:$0xff]
    %v281 = vld [vmem:[%s4 + $0xe0] sm:$0xff]
    %v282 = vld [vmem:[%s4 + $0xe8] sm:$0xff]
    %v283 = vld [vmem:[%s4 + $0xf0] sm:$0xff]
    %v284 = vld [vmem:[%s4 + $0xf8] sm:$0xff]
    %v285 = vpack.c.bf16 %v252, %v251
    %v286 = vld [vmem:[%s5] sm:$0xf]
    %v288 = vperm.slane %v286, 0
    %v289 = vperm.slane %v286, 1
    %v290 = vperm.slane %v286, 2
    %v291 = vperm.slane %v286, 3
    %v328 = vunpack.c.l.b16 %v253
    %v329 = vunpack.c.h.b16 %v253
    %v330 = vunpack.c.l.b16 %v254
    %v331 = vunpack.c.h.b16 %v254
    %v332 = vunpack.c.l.b16 %v255
    %v333 = vunpack.c.h.b16 %v255
    %v334 = vunpack.c.l.b16 %v256
    %v335 = vunpack.c.h.b16 %v256
    %v336 = vunpack.c.l.b16 %v257
    %v337 = vunpack.c.h.b16 %v257
    %v338 = vunpack.c.l.b16 %v258
    %v339 = vunpack.c.h.b16 %v258
    %v340 = vunpack.c.l.b16 %v259
    %v341 = vunpack.c.h.b16 %v259
    %v342 = vunpack.c.l.b16 %v260
    %v343 = vunpack.c.h.b16 %v260
    %v344 = vunpack.c.l.b16 %v261
    %v345 = vunpack.c.h.b16 %v261
    %v346 = vunpack.c.l.b16 %v262
    %v347 = vunpack.c.h.b16 %v262
    %v348 = vunpack.c.l.b16 %v263
    %v349 = vunpack.c.h.b16 %v263
    %v350 = vunpack.c.l.b16 %v264
    %v351 = vunpack.c.h.b16 %v264
    %v352 = vunpack.c.l.b16 %v265
    %v353 = vunpack.c.h.b16 %v265
    %v354 = vunpack.c.l.b16 %v266
    %v355 = vunpack.c.h.b16 %v266
    %v356 = vunpack.c.l.b16 %v267
    %v357 = vunpack.c.h.b16 %v267
    %v358 = vunpack.c.l.b16 %v268
    %v359 = vunpack.c.h.b16 %v268
    %v360 = vunpack.c.l.b16 %v269
    %v361 = vunpack.c.h.b16 %v269
    %v362 = vunpack.c.l.b16 %v270
    %v363 = vunpack.c.h.b16 %v270
    %v364 = vunpack.c.l.b16 %v271
    %v365 = vunpack.c.h.b16 %v271
    %v366 = vunpack.c.l.b16 %v272
    %v367 = vunpack.c.h.b16 %v272
    %v368 = vunpack.c.l.b16 %v273
    %v369 = vunpack.c.h.b16 %v273
    %v370 = vunpack.c.l.b16 %v274
    %v371 = vunpack.c.h.b16 %v274
    %v372 = vunpack.c.l.b16 %v275
    %v373 = vunpack.c.h.b16 %v275
    %v374 = vunpack.c.l.b16 %v276
    %v375 = vunpack.c.h.b16 %v276
    %v376 = vunpack.c.l.b16 %v277
    %v377 = vunpack.c.h.b16 %v277
    %v378 = vunpack.c.l.b16 %v278
    %v379 = vunpack.c.h.b16 %v278
    %v380 = vunpack.c.l.b16 %v279
    %v381 = vunpack.c.h.b16 %v279
    %v382 = vunpack.c.l.b16 %v280
    %v383 = vunpack.c.h.b16 %v280
    %v384 = vunpack.c.l.b16 %v281
    %v385 = vunpack.c.h.b16 %v281
    %v386 = vunpack.c.l.b16 %v282
    %v387 = vunpack.c.h.b16 %v282
    %v388 = vunpack.c.l.b16 %v283
    %v389 = vunpack.c.h.b16 %v283
    %v390 = vunpack.c.l.b16 %v284
    %v391 = vunpack.c.h.b16 %v284
    %v392 = vpack.c.b16 %v332, %v328
    %v393 = vpack.c.b16 %v333, %v329
    %v394 = vpack.c.b16 %v334, %v330
    %v395 = vpack.c.b16 %v335, %v331
    %v396 = vpack.c.b16 %v340, %v336
    %v397 = vpack.c.b16 %v341, %v337
    %v398 = vpack.c.b16 %v342, %v338
    %v399 = vpack.c.b16 %v343, %v339
    %v400 = vpack.c.b16 %v348, %v344
    %v401 = vpack.c.b16 %v349, %v345
    %v402 = vpack.c.b16 %v350, %v346
    %v403 = vpack.c.b16 %v351, %v347
    %v404 = vpack.c.b16 %v356, %v352
    %v405 = vpack.c.b16 %v357, %v353
    %v406 = vpack.c.b16 %v358, %v354
    %v407 = vpack.c.b16 %v359, %v355
    %v408 = vpack.c.b16 %v364, %v360
    %v409 = vpack.c.b16 %v365, %v361
    %v410 = vpack.c.b16 %v366, %v362
    %v411 = vpack.c.b16 %v367, %v363
    %v412 = vpack.c.b16 %v372, %v368
    %v413 = vpack.c.b16 %v373, %v369
    %v414 = vpack.c.b16 %v374, %v370
    %v415 = vpack.c.b16 %v375, %v371
    %v416 = vpack.c.b16 %v380, %v376
    %v417 = vpack.c.b16 %v381, %v377
    %v418 = vpack.c.b16 %v382, %v378
    %v419 = vpack.c.b16 %v383, %v379
    %v420 = vpack.c.b16 %v388, %v384
    %v421 = vpack.c.b16 %v389, %v385
    %v422 = vpack.c.b16 %v390, %v386
    %v423 = vpack.c.b16 %v391, %v387
    %456 = vmatpush.bf16.msra.mxu0 %v420
    %457 = vmatpush.bf16.msra.mxu0 %v416
    %458 = vmatpush.bf16.msra.mxu0 %v412
    %459 = vmatpush.bf16.msra.mxu0 %v408
    %460 = vmatpush.bf16.msra.mxu0 %v404
    %461 = vmatpush.bf16.msra.mxu0 %v400
    %462 = vmatpush.bf16.msra.mxu0 %v396
    %463 = vmatpush.bf16.msra.mxu0 %v392
    %464 = vmatmul.bf16.gmra.mxu0 %v285
    %v465 = vpop.f32.mrf.mxu0
    %v466 = vadd.f32 %v288, %v465
    %v467 = vpop.f32.mrf.mxu0
    %v468 = vadd.f32 %v288, %v467
    %469 = vdwg.mxu0
    %470 = vmatpush.bf16.msra.mxu0 %v421
    %471 = vmatpush.bf16.msra.mxu0 %v417
    %472 = vmatpush.bf16.msra.mxu0 %v413
    %473 = vmatpush.bf16.msra.mxu0 %v409
    %474 = vmatpush.bf16.msra.mxu0 %v405
    %475 = vmatpush.bf16.msra.mxu0 %v401
    %476 = vmatpush.bf16.msra.mxu0 %v397
    %477 = vmatpush.bf16.msra.mxu0 %v393
    %478 = vmatmul.bf16.gmra.mxu0 %v285
    %v479 = vpop.f32.mrf.mxu0
    %v480 = vadd.f32 %v289, %v479
    %v481 = vpop.f32.mrf.mxu0
    %v482 = vadd.f32 %v289, %v481
    %483 = vdwg.mxu0
    %484 = vmatpush.bf16.msra.mxu0 %v422
    %485 = vmatpush.bf16.msra.mxu0 %v418
    %486 = vmatpush.bf16.msra.mxu0 %v414
    %487 = vmatpush.bf16.msra.mxu0 %v410
    %488 = vmatpush.bf16.msra.mxu0 %v406
    %489 = vmatpush.bf16.msra.mxu0 %v402
    %490 = vmatpush.bf16.msra.mxu0 %v398
    %491 = vmatpush.bf16.msra.mxu0 %v394
    %492 = vmatmul.bf16.gmra.mxu0 %v285
    %v493 = vpop.f32.mrf.mxu0
    %v494 = vadd.f32 %v290, %v493
    %v495 = vpop.f32.mrf.mxu0
    %v496 = vadd.f32 %v290, %v495
    %497 = vdwg.mxu0
    %498 = vmatpush.bf16.msra.mxu0 %v423
    %499 = vmatpush.bf16.msra.mxu0 %v419
    %500 = vmatpush.bf16.msra.mxu0 %v415
    %501 = vmatpush.bf16.msra.mxu0 %v411
    %502 = vmatpush.bf16.msra.mxu0 %v407
    %503 = vmatpush.bf16.msra.mxu0 %v403
    %504 = vmatpush.bf16.msra.mxu0 %v399
    %505 = vmatpush.bf16.msra.mxu0 %v395
    %506 = vmatmul.bf16.gmra.mxu0 %v285
    %v507 = vpop.f32.mrf.mxu0
    %v508 = vadd.f32 %v291, %v507
    %v509 = vpop.f32.mrf.mxu0
    %v510 = vadd.f32 %v291, %v509
    %511 = vdwg.mxu0
    %v512 = vpack.c.bf16 %v480, %v466
    %v513 = vpack.c.bf16 %v482, %v468
    %v515 = vunpack.c.l.b16 %v512
    %v516 = vunpack.c.h.b16 %v512
    %v517 = vpack.c.b16 %v515, %v515
    %v518 = vpack.c.b16 %v516, %v516
    %v520 = vsel %vm211, %v517, 0
    %v523 = vsel %vm211, %v518, 0
    %525 = vmatpush.bf16.msra.mxu0 0
    %526 = vmatpush.bf16.msra.mxu0 0
    %527 = vmatpush.bf16.msra.mxu0 0
    %528 = vmatpush.bf16.msra.mxu0 0
    %529 = vmatpush.bf16.msra.mxu0 0
    %530 = vmatpush.bf16.msra.mxu0 0
    %531 = vmatpush.bf16.msra.mxu0 0
    %532 = vmatpush.bf16.msra.mxu0 %v520
    %533 = vmatmul.bf16.gmra.mxu0 %v209
    %v534 = vpop.f32.mrf.mxu0
    %v535 = vadd.f32 0.0, %v534
    %v536 = vpop.f32.mrf.mxu0
    %537 = vdwg.mxu0
    %538 = vmatpush.bf16.msra.mxu0 0
    %539 = vmatpush.bf16.msra.mxu0 0
    %540 = vmatpush.bf16.msra.mxu0 0
    %541 = vmatpush.bf16.msra.mxu0 0
    %542 = vmatpush.bf16.msra.mxu0 0
    %543 = vmatpush.bf16.msra.mxu0 0
    %544 = vmatpush.bf16.msra.mxu0 0
    %545 = vmatpush.bf16.msra.mxu0 %v523
    %546 = vmatmul.bf16.gmra.mxu0 %v209
    %v547 = vpop.f32.mrf.mxu0
    %v548 = vadd.f32 0.0, %v547
    %v549 = vpop.f32.mrf.mxu0
    %550 = vdwg.mxu0
    %v552 = vunpack.c.l.b16 %v513
    %v553 = vunpack.c.h.b16 %v513
    %v554 = vpack.c.b16 %v552, %v552
    %v555 = vpack.c.b16 %v553, %v553
    %v557 = vsel %vm211, %v554, 0
    %v560 = vsel %vm211, %v555, 0
    %562 = vmatpush.bf16.msra.mxu0 0
    %563 = vmatpush.bf16.msra.mxu0 0
    %564 = vmatpush.bf16.msra.mxu0 0
    %565 = vmatpush.bf16.msra.mxu0 0
    %566 = vmatpush.bf16.msra.mxu0 0
    %567 = vmatpush.bf16.msra.mxu0 0
    %568 = vmatpush.bf16.msra.mxu0 0
    %569 = vmatpush.bf16.msra.mxu0 %v557
    %570 = vmatmul.bf16.gmra.mxu0 %v229
    %v571 = vpop.f32.mrf.mxu0
    %v572 = vadd.f32 0.0, %v571
    %v573 = vpop.f32.mrf.mxu0
    %574 = vdwg.mxu0
    %575 = vmatpush.bf16.msra.mxu0 0
    %576 = vmatpush.bf16.msra.mxu0 0
    %577 = vmatpush.bf16.msra.mxu0 0
    %578 = vmatpush.bf16.msra.mxu0 0
    %579 = vmatpush.bf16.msra.mxu0 0
    %580 = vmatpush.bf16.msra.mxu0 0
    %581 = vmatpush.bf16.msra.mxu0 0
    %582 = vmatpush.bf16.msra.mxu0 %v560
    %583 = vmatmul.bf16.gmra.mxu0 %v229
    %v584 = vpop.f32.mrf.mxu0
    %v585 = vadd.f32 0.0, %v584
    %v586 = vpop.f32.mrf.mxu0
    %587 = vdwg.mxu0
    %v588 = vadd.f32 %v494, %v535
    %v589 = vadd.f32 %v508, %v548
    %v590 = vadd.f32 %v496, %v572
    %v591 = vadd.f32 %v510, %v585
    %592 = vst [vmem:[%s9] sm:$0xff] %v588
    %593 = vst [vmem:[%s9 + $0x8] sm:$0xff] %v589
    %594 = vst [vmem:[%s9 + $0x10] sm:$0xff] %v590
    %595 = vst [vmem:[%s9 + $0x18] sm:$0xff] %v591
    %v596 = vmax.f32 %v588, 0.0
    %v597 = vmax.f32 %v589, 0.0
    %v598 = vmax.f32 %v590, 0.0
    %v599 = vmax.f32 %v591, 0.0
    %v600 = vld [vmem:[#allocation4] sm:$0xff]
    %v601 = vld [vmem:[#allocation4 + $0x8] sm:$0xff]
    %v602 = vld [vmem:[#allocation4 + $0x10] sm:$0xff]
    %v603 = vld [vmem:[#allocation4 + $0x18] sm:$0xff]
    %v604 = vld [vmem:[#allocation4 + $0x20] sm:$0xff]
    %v605 = vld [vmem:[#allocation4 + $0x28] sm:$0xff]
    %v606 = vld [vmem:[#allocation4 + $0x30] sm:$0xff]
    %v607 = vld [vmem:[#allocation4 + $0x38] sm:$0xff]
    %v608 = vld [vmem:[#allocation4 + $0x40] sm:$0xff]
    %v609 = vld [vmem:[#allocation4 + $0x48] sm:$0xff]
    %v610 = vld [vmem:[#allocation4 + $0x50] sm:$0xff]
    %v611 = vld [vmem:[#allocation4 + $0x58] sm:$0xff]
    %v612 = vld [vmem:[#allocation4 + $0x60] sm:$0xff]
    %v613 = vld [vmem:[#allocation4 + $0x68] sm:$0xff]
    %v614 = vld [vmem:[#allocation4 + $0x70] sm:$0xff]
    %v615 = vld [vmem:[#allocation4 + $0x78] sm:$0xff]
    %v616 = vld [vmem:[#allocation4 + $0x80] sm:$0xff]
    %v617 = vld [vmem:[#allocation4 + $0x88] sm:$0xff]
    %v618 = vld [vmem:[#allocation4 + $0x90] sm:$0xff]
    %v619 = vld [vmem:[#allocation4 + $0x98] sm:$0xff]
    %v620 = vld [vmem:[#allocation4 + $0xa0] sm:$0xff]
    %v621 = vld [vmem:[#allocation4 + $0xa8] sm:$0xff]
    %v622 = vld [vmem:[#allocation4 + $0xb0] sm:$0xff]
    %v623 = vld [vmem:[#allocation4 + $0xb8] sm:$0xff]
    %v624 = vld [vmem:[#allocation4 + $0xc0] sm:$0xff]
    %v625 = vld [vmem:[#allocation4 + $0xc8] sm:$0xff]
    %v626 = vld [vmem:[#allocation4 + $0xd0] sm:$0xff]
    %v627 = vld [vmem:[#allocation4 + $0xd8] sm:$0xff]
    %v628 = vld [vmem:[#allocation4 + $0xe0] sm:$0xff]
    %v629 = vld [vmem:[#allocation4 + $0xe8] sm:$0xff]
    %v630 = vld [vmem:[#allocation4 + $0xf0] sm:$0xff]
    %v631 = vld [vmem:[#allocation4 + $0xf8] sm:$0xff]
    %v632 = vpack.c.bf16 %v598, %v596
    %v633 = vpack.c.bf16 %v599, %v597
    %v634 = vld [vmem:[%s7] sm:$0x3]
    %v636 = vperm.slane %v634, 0
    %v637 = vperm.slane %v634, 1
    %v672 = vunpack.c.l.b16 %v600
    %v673 = vunpack.c.h.b16 %v600
    %v674 = vunpack.c.l.b16 %v601
    %v675 = vunpack.c.h.b16 %v601
    %v676 = vunpack.c.l.b16 %v602
    %v677 = vunpack.c.h.b16 %v602
    %v678 = vunpack.c.l.b16 %v603
    %v679 = vunpack.c.h.b16 %v603
    %v680 = vunpack.c.l.b16 %v604
    %v681 = vunpack.c.h.b16 %v604
    %v682 = vunpack.c.l.b16 %v605
    %v683 = vunpack.c.h.b16 %v605
    %v684 = vunpack.c.l.b16 %v606
    %v685 = vunpack.c.h.b16 %v606
    %v686 = vunpack.c.l.b16 %v607
    %v687 = vunpack.c.h.b16 %v607
    %v688 = vunpack.c.l.b16 %v608
    %v689 = vunpack.c.h.b16 %v608
    %v690 = vunpack.c.l.b16 %v609
    %v691 = vunpack.c.h.b16 %v609
    %v692 = vunpack.c.l.b16 %v610
    %v693 = vunpack.c.h.b16 %v610
    %v694 = vunpack.c.l.b16 %v611
    %v695 = vunpack.c.h.b16 %v611
    %v696 = vunpack.c.l.b16 %v612
    %v697 = vunpack.c.h.b16 %v612
    %v698 = vunpack.c.l.b16 %v613
    %v699 = vunpack.c.h.b16 %v613
    %v700 = vunpack.c.l.b16 %v614
    %v701 = vunpack.c.h.b16 %v614
    %v702 = vunpack.c.l.b16 %v615
    %v703 = vunpack.c.h.b16 %v615
    %v704 = vunpack.c.l.b16 %v616
    %v705 = vunpack.c.h.b16 %v616
    %v706 = vunpack.c.l.b16 %v617
    %v707 = vunpack.c.h.b16 %v617
    %v708 = vunpack.c.l.b16 %v618
    %v709 = vunpack.c.h.b16 %v618
    %v710 = vunpack.c.l.b16 %v619
    %v711 = vunpack.c.h.b16 %v619
    %v712 = vunpack.c.l.b16 %v620
    %v713 = vunpack.c.h.b16 %v620
    %v714 = vunpack.c.l.b16 %v621
    %v715 = vunpack.c.h.b16 %v621
    %v716 = vunpack.c.l.b16 %v622
    %v717 = vunpack.c.h.b16 %v622
    %v718 = vunpack.c.l.b16 %v623
    %v719 = vunpack.c.h.b16 %v623
    %v720 = vunpack.c.l.b16 %v624
    %v721 = vunpack.c.h.b16 %v624
    %v722 = vunpack.c.l.b16 %v625
    %v723 = vunpack.c.h.b16 %v625
    %v724 = vunpack.c.l.b16 %v626
    %v725 = vunpack.c.h.b16 %v626
    %v726 = vunpack.c.l.b16 %v627
    %v727 = vunpack.c.h.b16 %v627
    %v728 = vunpack.c.l.b16 %v628
    %v729 = vunpack.c.h.b16 %v628
    %v730 = vunpack.c.l.b16 %v629
    %v731 = vunpack.c.h.b16 %v629
    %v732 = vunpack.c.l.b16 %v630
    %v733 = vunpack.c.h.b16 %v630
    %v734 = vunpack.c.l.b16 %v631
    %v735 = vunpack.c.h.b16 %v631
    %v736 = vpack.c.b16 %v674, %v672
    %v737 = vpack.c.b16 %v675, %v673
    %v738 = vpack.c.b16 %v678, %v676
    %v739 = vpack.c.b16 %v679, %v677
    %v740 = vpack.c.b16 %v682, %v680
    %v741 = vpack.c.b16 %v683, %v681
    %v742 = vpack.c.b16 %v686, %v684
    %v743 = vpack.c.b16 %v687, %v685
    %v744 = vpack.c.b16 %v690, %v688
    %v745 = vpack.c.b16 %v691, %v689
    %v746 = vpack.c.b16 %v694, %v692
    %v747 = vpack.c.b16 %v695, %v693
    %v748 = vpack.c.b16 %v698, %v696
    %v749 = vpack.c.b16 %v699, %v697
    %v750 = vpack.c.b16 %v702, %v700
    %v751 = vpack.c.b16 %v703, %v701
    %v752 = vpack.c.b16 %v706, %v704
    %v753 = vpack.c.b16 %v707, %v705
    %v754 = vpack.c.b16 %v710, %v708
    %v755 = vpack.c.b16 %v711, %v709
    %v756 = vpack.c.b16 %v714, %v712
    %v757 = vpack.c.b16 %v715, %v713
    %v758 = vpack.c.b16 %v718, %v716
    %v759 = vpack.c.b16 %v719, %v717
    %v760 = vpack.c.b16 %v722, %v720
    %v761 = vpack.c.b16 %v723, %v721
    %v762 = vpack.c.b16 %v726, %v724
    %v763 = vpack.c.b16 %v727, %v725
    %v764 = vpack.c.b16 %v730, %v728
    %v765 = vpack.c.b16 %v731, %v729
    %v766 = vpack.c.b16 %v734, %v732
    %v767 = vpack.c.b16 %v735, %v733
    %800 = vmatpush.bf16.msra.mxu0 %v750
    %801 = vmatpush.bf16.msra.mxu0 %v748
    %802 = vmatpush.bf16.msra.mxu0 %v746
    %803 = vmatpush.bf16.msra.mxu0 %v744
    %804 = vmatpush.bf16.msra.mxu0 %v742
    %805 = vmatpush.bf16.msra.mxu0 %v740
    %806 = vmatpush.bf16.msra.mxu0 %v738
    %807 = vmatpush.bf16.msra.mxu0 %v736
    %808 = vmatmul.bf16.gmra.mxu0 %v632
    %v809 = vpop.f32.mrf.mxu0
    %v810 = vadd.f32 %v636, %v809
    %v811 = vpop.f32.mrf.mxu0
    %v812 = vadd.f32 %v636, %v811
    %813 = vdwg.mxu0
    %814 = vmatpush.bf16.msra.mxu0 %v766
    %815 = vmatpush.bf16.msra.mxu0 %v764
    %816 = vmatpush.bf16.msra.mxu0 %v762
    %817 = vmatpush.bf16.msra.mxu0 %v760
    %818 = vmatpush.bf16.msra.mxu0 %v758
    %819 = vmatpush.bf16.msra.mxu0 %v756
    %820 = vmatpush.bf16.msra.mxu0 %v754
    %821 = vmatpush.bf16.msra.mxu0 %v752
    %822 = vmatmul.bf16.gmra.mxu0 %v633
    %v823 = vpop.f32.mrf.mxu0
    %v824 = vadd.f32 %v810, %v823
    %v825 = vpop.f32.mrf.mxu0
    %v826 = vadd.f32 %v812, %v825
    %827 = vdwg.mxu0
    %828 = vmatpush.bf16.msra.mxu0 %v751
    %829 = vmatpush.bf16.msra.mxu0 %v749
    %830 = vmatpush.bf16.msra.mxu0 %v747
    %831 = vmatpush.bf16.msra.mxu0 %v745
    %832 = vmatpush.bf16.msra.mxu0 %v743
    %833 = vmatpush.bf16.msra.mxu0 %v741
    %834 = vmatpush.bf16.msra.mxu0 %v739
    %835 = vmatpush.bf16.msra.mxu0 %v737
    %836 = vmatmul.bf16.gmra.mxu0 %v632
    %v837 = vpop.f32.mrf.mxu0
    %v838 = vadd.f32 %v637, %v837
    %v839 = vpop.f32.mrf.mxu0
    %v840 = vadd.f32 %v637, %v839
    %841 = vdwg.mxu0
    %842 = vmatpush.bf16.msra.mxu0 %v767
    %843 = vmatpush.bf16.msra.mxu0 %v765
    %844 = vmatpush.bf16.msra.mxu0 %v763
    %845 = vmatpush.bf16.msra.mxu0 %v761
    %846 = vmatpush.bf16.msra.mxu0 %v759
    %847 = vmatpush.bf16.msra.mxu0 %v757
    %848 = vmatpush.bf16.msra.mxu0 %v755
    %849 = vmatpush.bf16.msra.mxu0 %v753
    %850 = vmatmul.bf16.gmra.mxu0 %v633
    %v851 = vpop.f32.mrf.mxu0
    %v852 = vadd.f32 %v838, %v851
    %v853 = vpop.f32.mrf.mxu0
    %v854 = vadd.f32 %v840, %v853
    %855 = vdwg.mxu0
    %v856 = vpack.c.bf16 %v824, %v824
    %v857 = vpack.c.bf16 %v826, %v826
    %v859 = vsel %vm211, %v856, 0
    %861 = vmatpush.bf16.msra.mxu0 0
    %862 = vmatpush.bf16.msra.mxu0 0
    %863 = vmatpush.bf16.msra.mxu0 0
    %864 = vmatpush.bf16.msra.mxu0 0
    %865 = vmatpush.bf16.msra.mxu0 0
    %866 = vmatpush.bf16.msra.mxu0 0
    %867 = vmatpush.bf16.msra.mxu0 0
    %868 = vmatpush.bf16.msra.mxu0 %v859
    %869 = vmatmul.bf16.gmra.mxu0 %v209
    %v870 = vpop.f32.mrf.mxu0
    %v871 = vadd.f32 0.0, %v870
    %v872 = vpop.f32.mrf.mxu0
    %873 = vdwg.mxu0
    %v875 = vsel %vm211, %v857, 0
    %877 = vmatpush.bf16.msra.mxu0 0
    %878 = vmatpush.bf16.msra.mxu0 0
    %879 = vmatpush.bf16.msra.mxu0 0
    %880 = vmatpush.bf16.msra.mxu0 0
    %881 = vmatpush.bf16.msra.mxu0 0
    %882 = vmatpush.bf16.msra.mxu0 0
    %883 = vmatpush.bf16.msra.mxu0 0
    %884 = vmatpush.bf16.msra.mxu0 %v875
    %885 = vmatmul.bf16.gmra.mxu0 %v229
    %v886 = vpop.f32.mrf.mxu0
    %v887 = vadd.f32 0.0, %v886
    %v888 = vpop.f32.mrf.mxu0
    %889 = vdwg.mxu0
    %v890 = vadd.f32 %v852, %v871
    %v891 = vadd.f32 %v854, %v887
    %892 = vst [vmem:[%s10] sm:$0xff] %v890
    %893 = vst [vmem:[%s10 + $0x8] sm:$0xff] %v891
    // Predicated region
    $region42: #{graph_and_conv_stack.1} parent=1 // pred_check
      _
    $region43: #{graph_and_conv_stack.1} parent=1 // pred_check_branch
      %895 = sbr.rel (0) target = $region45
    $region44: #{graph_and_conv_stack.1} parent=1 // pred_region
      _
    $region45: #{graph_and_conv_stack.1} parent=1 // pred_fallthru
      _
    // Predicated region
    $region46: #{graph_and_conv_stack.1} parent=1 // pred_check
      _
    $region47: #{graph_and_conv_stack.1} parent=1 // pred_check_branch
      %897 = sbr.rel (0) target = $region49
    $region48: #{graph_and_conv_stack.1} parent=1 // pred_region
      _
    $region49: #{graph_and_conv_stack.1} parent=1 // pred_fallthru
      _
    // Predicated region
    $region50: #{graph_and_conv_stack.1} parent=1 // pred_check
      _
    $region51: #{graph_and_conv_stack.1} parent=1 // pred_check_branch
      %899 = sbr.rel (0) target = $region53
    $region52: #{graph_and_conv_stack.1} parent=1 // pred_region
      _
    $region53: #{graph_and_conv_stack.1} parent=1 // pred_fallthru
      _
    // Predicated region
    $region54: #{graph_and_conv_stack.1} parent=1 // pred_check
      _
    $region55: #{graph_and_conv_stack.1} parent=1 // pred_check_branch
      %901 = sbr.rel (0) target = $region57
    $region56: #{graph_and_conv_stack.1} parent=1 // pred_region
      _
    $region57: #{graph_and_conv_stack.1} parent=1 // pred_fallthru
      _
    // Predicated region
    $region58: #{graph_and_conv_stack.1} parent=1 // pred_check
      _
    $region59: #{graph_and_conv_stack.1} parent=1 // pred_check_branch
      %903 = sbr.rel (0) target = $region61
    $region60: #{graph_and_conv_stack.1} parent=1 // pred_region
      _
    $region61: #{graph_and_conv_stack.1} parent=1 // pred_fallthru
      _
    // Predicated region
    $region62: #{graph_and_conv_stack.1} parent=1 // pred_check
      _
    $region63: #{graph_and_conv_stack.1} parent=1 // pred_check_branch
      %905 = sbr.rel (0) target = $region65
    $region64: #{graph_and_conv_stack.1} parent=1 // pred_region
      _
    $region65: #{graph_and_conv_stack.1} parent=1 // pred_fallthru
      _
    %906 = vsyncpa [#allocation3], 1
    %907 = vsyncpa [#allocation5], 1

</llo_original>
